<compile_context>
chip_gen: v5e
topology: v5e:2x2
jax: 0.10.0
libtpu: 0.0.40
codegen_flags: <defaults>
</compile_context>

<pallas_src>
import functools

import jax
import jax.numpy as jnp
from jax.experimental import pallas as pl
from jax.experimental.pallas import tpu as pltpu


# --------------------------------------------------------------------------- #
# Hardware-aware helpers
# --------------------------------------------------------------------------- #
def _vmem_budget_bytes():
    """Generation-aware scoped-VMEM budget (leaves compiler headroom)."""
    try:
        cap = int(getattr(pltpu.get_tpu_info(), "vmem_capacity_bytes", 64 * 2**20))
    except Exception:
        cap = 64 * 2**20                       # conservative (v7x-sized) fallback
    if cap > 96 * 2**20:                       # v5e / v6e: 128 MiB physical
        return int(cap * 0.85)                 # ~108 MiB
    return max(cap - 12 * 2**20, 32 * 2**20)   # v7x: 64 MiB physical -> ~52 MiB


def _choose_seq_tile(T, cap):
    """Largest tile (<=cap, multiple of 8) that divides T; else one full tile."""
    for cand in (512, 256, 128, 64, 32, 16, 8):
        if cand <= cap and T % cand == 0:
            return cand
    return T  # block == full dim is always a legal block shape


def _heads_per_group(head_num, d):
    """Group heads so the combined lane width (heads*d) is 128-aligned."""
    if head_num * d <= 128:
        return head_num            # all heads in one batched group (full width)
    if d >= 128:
        return 1                   # a single head is already lane-dense
    if 128 % d == 0 and head_num % (128 // d) == 0:
        return 128 // d            # e.g. d=64 -> 2 heads per group (128 lanes)
    return 1                       # fallback: per-head (masked stores, correct)


def _const_spec(shape, resident):
    """Spec for a grid-invariant operand (weights / biases / LN params)."""
    if resident:
        # Whole array resident in VMEM: single copy, no double buffering.
        return pl.BlockSpec(memory_space=pltpu.MemorySpace.VMEM)
    # Fallback: full-shape block with a constant index_map (not re-fetched,
    # but double-buffered by the default pipeline).
    return pl.BlockSpec(shape, lambda *_: (0,) * len(shape))


# --------------------------------------------------------------------------- #
# Kernels
# --------------------------------------------------------------------------- #
def _kv_proj_kernel(x_ref, wkv_ref, kv_ref):
    # Fused [K | V] projection for one (row-tile, batch) block.
    kv_ref[0] = jnp.dot(x_ref[0], wkv_ref[...],
                        preferred_element_type=jnp.float32).astype(kv_ref.dtype)


def _encoder_block_kernel(x_ref, kv_ref, wq_ref, wo_ref,
                          w1_ref, b1_ref, w2_ref, b2_ref,
                          g1_ref, be1_ref, g2_ref, be2_ref,
                          o_ref, attn_acc, *, head_num, heads_per_group, dk_scale):
    f32 = jnp.float32
    E = x_ref.shape[-1]
    TQ = x_ref.shape[1]
    d = E // head_num
    hg = heads_per_group
    gw = hg * d
    cdt = attn_acc.dtype                     # compute dtype (bf16)

    xt = x_ref[0]                            # (TQ, E)   query-row tile (bf16)
    kv = kv_ref[0]                           # (T, 2E)   precomputed [K | V] (bf16)
    T = kv.shape[0]

    # Q projection for this row tile (MXU, f32 accumulate, round to bf16).
    q = jnp.dot(xt, wq_ref[...], preferred_element_type=f32).astype(cdt)

    # Attention, batched over head groups whose width is a multiple of 128
    # lanes: unmasked attn_acc stores, tile-aligned q/k/v column slices.
    # (group count <= E/128, so a small static unroll is fine.)
    for g in range(head_num // hg):
        c0 = g * gw
        qg = q[:, c0:c0 + gw].reshape(TQ, hg, d)
        kg = kv[:, c0:c0 + gw].reshape(T, hg, d)
        vg = kv[:, E + c0:E + c0 + gw].reshape(T, hg, d)

        # energy[h, i, j] = sum_d q[i,h,d] * k[j,h,d]   (no explicit .T)
        energy = jax.lax.dot_general(
            qg, kg, dimension_numbers=(((2,), (2,)), ((1,), (1,))),
            preferred_element_type=f32) * dk_scale            # (hg, TQ, T)
        energy = energy - jnp.max(energy, axis=-1, keepdims=True)
        p = jnp.exp(energy)
        inv = pl.reciprocal(jnp.sum(p, axis=-1, keepdims=True), approx=True)  # EUP
        probs = (p * inv).astype(cdt)

        ctx = jax.lax.dot_general(
            probs, vg, dimension_numbers=(((2,), (0,)), ((0,), (1,))),
            preferred_element_type=f32)                       # (hg, TQ, d)
        attn_acc[:, c0:c0 + gw] = (
            jnp.transpose(ctx, (1, 0, 2)).reshape(TQ, gw).astype(cdt))

    attn_out = jnp.dot(attn_acc[...], wo_ref[...], preferred_element_type=f32)

    # dropout (p=0.1) -> identity in eval mode
    x1 = xt.astype(f32) + attn_out

    # --- layer norm 1 (f32 elementwise) ---------------------------------------
    mu1 = jnp.mean(x1, axis=-1, keepdims=True)
    var1 = jnp.mean((x1 - mu1) ** 2, axis=-1, keepdims=True)
    xn = ((x1 - mu1) * jax.lax.rsqrt(var1 + 1e-5)
          * g1_ref[0].astype(f32) + be1_ref[0].astype(f32))

    # --- MLP: Linear -> GELU(erf) -> (Dropout) -> Linear -> (Dropout) ---------
    h1 = (jnp.dot(xn.astype(cdt), w1_ref[...], preferred_element_type=f32)
          + b1_ref[0].astype(f32))
    h1 = 0.5 * h1 * (1.0 + jax.lax.erf(h1 * 0.7071067811865476))   # exact GELU
    h2 = (jnp.dot(h1.astype(cdt), w2_ref[...], preferred_element_type=f32)
          + b2_ref[0].astype(f32))

    x2 = xn + h2

    # --- layer norm 2 ----------------------------------------------------------
    mu2 = jnp.mean(x2, axis=-1, keepdims=True)
    var2 = jnp.mean((x2 - mu2) ** 2, axis=-1, keepdims=True)
    y = ((x2 - mu2) * jax.lax.rsqrt(var2 + 1e-5)
         * g2_ref[0].astype(f32) + be2_ref[0].astype(f32))

    o_ref[0] = y.astype(o_ref.dtype)


# --------------------------------------------------------------------------- #
# pallas_call wrappers
# --------------------------------------------------------------------------- #
def _kv_projection(xc, wkv, *, tile, vmem_limit, resident_consts):
    B, T, E = xc.shape
    cbytes = xc.dtype.itemsize
    flops = 4 * B * T * E * E
    bytes_accessed = cbytes * (B * T * E + 2 * E * E + B * T * 2 * E)
    return pl.pallas_call(
        _kv_proj_kernel,
        out_shape=jax.ShapeDtypeStruct((B, T, 2 * E), xc.dtype),
        grid_spec=pltpu.PrefetchScalarGridSpec(
            num_scalar_prefetch=0,
            grid=(B, T // tile),
            in_specs=[pl.BlockSpec((1, tile, E), lambda b, t: (b, t, 0)),
                      _const_spec((E, 2 * E), resident_consts)],
            out_specs=pl.BlockSpec((1, tile, 2 * E), lambda b, t: (b, t, 0)),
        ),
        compiler_params=pltpu.CompilerParams(
            dimension_semantics=("parallel", "parallel"),
            vmem_limit_bytes=vmem_limit),
        cost_estimate=pl.CostEstimate(flops=flops, transcendentals=0,
                                      bytes_accessed=bytes_accessed),
    )(xc, wkv)


def _encoder_call(xc, kv, pc, *, head_num, dk_scale, out_dtype, tq, vmem_limit,
                  resident_consts, compute_dtype):
    B, T, E = xc.shape
    M = pc["w1"].shape[1]
    d = E // head_num
    hg = _heads_per_group(head_num, d)
    cbytes = jnp.dtype(compute_dtype).itemsize

    kernel = functools.partial(_encoder_block_kernel, head_num=head_num,
                               heads_per_group=hg, dk_scale=dk_scale)
    cs = lambda shape: _const_spec(shape, resident_consts)

    flops = (2 * B * T * E * E            # Q projection
             + 4 * B * T * T * E          # energy + PV
             + 2 * B * T * E * E          # output projection
             + 4 * B * T * E * M)         # MLP
    transcendentals = B * T * (head_num * T + M)
    bytes_accessed = (cbytes * (B * T * E + B * T * 2 * E
                                + 2 * E * E + 2 * E * M + M + 5 * E)
                      + jnp.dtype(out_dtype).itemsize * B * T * E)

    return pl.pallas_call(
        kernel,
        out_shape=jax.ShapeDtypeStruct((B, T, E), out_dtype),
        grid_spec=pltpu.PrefetchScalarGridSpec(
            num_scalar_prefetch=0,
            grid=(B, T // tq),
            in_specs=[
                pl.BlockSpec((1, tq, E), lambda b, qi: (b, qi, 0)),    # x rows
                pl.BlockSpec((1, T, 2 * E), lambda b, qi: (b, 0, 0)),  # K|V (full seq)
                cs((E, E)),      # wq  (head-major)
                cs((E, E)),      # wo
                cs((E, M)),      # w1
                cs((1, M)),      # b1
                cs((M, E)),      # w2
                cs((1, E)),      # b2
                cs((1, E)),      # ln1 gamma
                cs((1, E)),      # ln1 beta
                cs((1, E)),      # ln2 gamma
                cs((1, E)),      # ln2 beta
            ],
            out_specs=pl.BlockSpec((1, tq, E), lambda b, qi: (b, qi, 0)),
            scratch_shapes=[pltpu.VMEM((tq, E), compute_dtype)],       # attn_acc
        ),
        compiler_params=pltpu.CompilerParams(
            dimension_semantics=("parallel", "parallel"),
            vmem_limit_bytes=vmem_limit),
        cost_estimate=pl.CostEstimate(flops=flops, transcendentals=transcendentals,
                                      bytes_accessed=bytes_accessed),
    )(xc, kv, pc["wq"], pc["wo"], pc["w1"], pc["b1"], pc["w2"], pc["b2"],
      pc["g1"], pc["be1"], pc["g2"], pc["be2"])


def transformer_encoder_block(x, params, *, head_num, compute_dtype=jnp.bfloat16):
    """x: (B, T, E).  params: dict of f32 weights (see init_params)."""
    B, T, E = x.shape
    assert E % head_num == 0, "embedding_dim must be divisible by head_num"
    d = E // head_num
    dk_scale = float(d ** 0.5)          # module MULTIPLIES by sqrt(d_head)

    cdt = compute_dtype
    xc = x.astype(cdt)
    pc = {k: v.astype(cdt) for k, v in params.items()}

    budget = _vmem_budget_bytes()
    tile_cap = 512 if budget > 64 * 2**20 else 256
    TQ = _choose_seq_tile(T, tile_cap)

    def run(resident_consts):
        kv = _kv_projection(xc, pc["wkv"], tile=TQ, vmem_limit=budget,
                            resident_consts=resident_consts)
        return _encoder_call(xc, kv, pc, head_num=head_num, dk_scale=dk_scale,
                             out_dtype=x.dtype, tq=TQ, vmem_limit=budget,
                             resident_consts=resident_consts, compute_dtype=cdt)

    try:
        return run(True)      # single-copy, VMEM-resident constants (preferred)
    except Exception:
        return run(False)     # fallback: constant-index-map blocked constants


# --------------------------------------------------------------------------- #
# Parameters & pure-JAX reference
# --------------------------------------------------------------------------- #
def init_params(key, embedding_dim, head_num, mlp_dim, dtype=jnp.float32):
    """Deterministic synthetic parameters.

    The qkv weight is created in PyTorch's fused '(d k h)' output ordering and
    then column-permuted into per-(q|k|v), head-major layout, exactly matching
    the einops rearrange 'b t (d k h) -> k b h t d' in the reference module.
    K and V are concatenated into one fused (E, 2E) projection weight.
    """
    E, H, M = embedding_dim, head_num, mlp_dim
    d = E // H
    ks = jax.random.split(key, 6)
    scale = 0.1

    w_qkv = jax.random.normal(ks[0], (E, 3 * E), jnp.float32) * scale  # (in, 3E)
    w_r = w_qkv.reshape(E, d, 3, H)                  # output columns = (d, k, h)
    head_major = lambda w: jnp.transpose(w, (0, 2, 1)).reshape(E, H * d)
    wq = head_major(w_r[:, :, 0, :])
    wk = head_major(w_r[:, :, 1, :])
    wv = head_major(w_r[:, :, 2, :])

    params = dict(
        wq=wq,
        wkv=jnp.concatenate([wk, wv], axis=1),       # fused K|V projection
        wo=jax.random.normal(ks[1], (E, E), jnp.float32) * scale,
        w1=jax.random.normal(ks[2], (E, M), jnp.float32) * scale,
        b1=(jax.random.normal(ks[3], (M,), jnp.float32) * scale).reshape(1, M),
        w2=jax.random.normal(ks[4], (M, E), jnp.float32) * scale,
        b2=(jax.random.normal(ks[5], (E,), jnp.float32) * scale).reshape(1, E),
        g1=jnp.ones((1, E), jnp.float32), be1=jnp.zeros((1, E), jnp.float32),
        g2=jnp.ones((1, E), jnp.float32), be2=jnp.zeros((1, E), jnp.float32),
    )
    return {k: v.astype(dtype) for k, v in params.items()}


def _reference(x, params, head_num, compute_dtype=jnp.bfloat16):
    """Pure-JAX reference mirroring the kernel's bf16-operand / f32-accum math."""
    f32 = jnp.float32
    cdt = compute_dtype
    E = x.shape[-1]
    d = E // head_num
    dk = float(d ** 0.5)

    p = {k: v.astype(cdt) for k, v in params.items()}
    xc = x.astype(cdt)
    mm = lambda a, b: jnp.einsum("...ij,jk->...ik", a, b,
                                 preferred_element_type=f32)

    def ln(v, g, b):
        mu = jnp.mean(v, axis=-1, keepdims=True)
        var = jnp.mean((v - mu) ** 2, axis=-1, keepdims=True)
        return (v - mu) / jnp.sqrt(var + 1e-5) * g + b

    B, T, _ = x.shape
    q = mm(xc, p["wq"]).astype(cdt)
    kv = mm(xc, p["wkv"]).astype(cdt)
    k, v = kv[..., :E], kv[..., E:]
    qh = q.reshape(B, T, head_num, d).transpose(0, 2, 1, 3)
    kh = k.reshape(B, T, head_num, d).transpose(0, 2, 1, 3)
    vh = v.reshape(B, T, head_num, d).transpose(0, 2, 1, 3)
    energy = jnp.einsum("bhid,bhjd->bhij", qh, kh, preferred_element_type=f32) * dk
    energy = energy - jnp.max(energy, axis=-1, keepdims=True)
    pr = jnp.exp(energy)
    attn = (pr / jnp.sum(pr, axis=-1, keepdims=True)).astype(cdt)
    ctx = jnp.einsum("bhij,bhjd->bhid", attn, vh, preferred_element_type=f32)
    ctx = ctx.transpose(0, 2, 1, 3).reshape(B, T, E).astype(cdt)
    attn_out = mm(ctx, p["wo"])

    x1 = xc.astype(f32) + attn_out
    xn = ln(x1, p["g1"][0].astype(f32), p["be1"][0].astype(f32))
    h1 = mm(xn.astype(cdt), p["w1"]) + p["b1"][0].astype(f32)
    h1 = 0.5 * h1 * (1.0 + jax.lax.erf(h1 * 0.7071067811865476))
    h2 = mm(h1.astype(cdt), p["w2"]) + p["b2"][0].astype(f32)
    x2 = xn + h2
    y = ln(x2, p["g2"][0].astype(f32), p["be2"][0].astype(f32))
    return y.astype(x.dtype)


# --------------------------------------------------------------------------- #
# Self-test
# --------------------------------------------------------------------------- #
if __name__ == "__main__":
    key = jax.random.PRNGKey(0)

    # Config 1: tiny (all heads in one group, single row tile).
    # Config 2: lane-aligned (E, M multiples of 128; d=64 -> 2 heads per group).
    configs = [
        dict(B=2, T=8, E=32, H=4, M=64),
        dict(B=2, T=128, E=256, H=4, M=512),
    ]
    for i, cfg in enumerate(configs):
        B, T, E, H, M = cfg["B"], cfg["T"], cfg["E"], cfg["H"], cfg["M"]
        kx, kp, key = jax.random.split(key, 3)
        x = jax.random.normal(kx, (B, T, E), jnp.float32)
        params = init_params(kp, E, H, M)

        out = transformer_encoder_block(x, params, head_num=H)
        out = jax.block_until_ready(out)

        ref = _reference(x, params, H)
        assert out.shape == (B, T, E)
        # Kernel and reference use identical bf16-operand / f32-accum math, so
        # residual differences come only from accumulation order, hardware
        # exp/erf and the approximate (EUP) softmax reciprocal.
        err = float(jnp.max(jnp.abs(out - ref)))
        assert jnp.allclose(out, ref, atol=2e-2, rtol=2e-2), (
            f"config {i}: mismatch vs reference (max abs err {err:.3e})")

    print("KERNEL_OK")
</pallas_src>

<mosaic_0001>
module attributes {stable_mosaic.version = 11 : i64} {
  func.func @_kv_proj_kernel(%arg0: i32, %arg1: i32, %arg2: memref<1x8x32xbf16, #tpu.memory_space<vmem>>, %arg3: memref<32x64xbf16, #tpu.memory_space<vmem>>, %arg4: memref<1x8x64xbf16, #tpu.memory_space<vmem>>) attributes {dimension_semantics = [#tpu.dimension_semantics<parallel>, #tpu.dimension_semantics<parallel>], iteration_bounds = array<i64: 2, 1>, scalar_prefetch = 0 : i64, scratch_operands = 0 : i64, tpu.core_type = #tpu.core_type<tc>, window_params = [{transform_indices = @transform_0, window_bounds = array<i64: 1, 8, 32>}, {pipeline_mode = #tpu.pipeline_mode<synchronous>, transform_indices = @transform_1, window_bounds = array<i64: 32, 64>}, {transform_indices = @transform_2, window_bounds = array<i64: 1, 8, 64>}]} {
    %c0 = arith.constant 0 : index
    %c0_0 = arith.constant 0 : index
    %c0_1 = arith.constant 0 : index
    %0 = vector.load %arg2[%c0, %c0_0, %c0_1] : memref<1x8x32xbf16, #tpu.memory_space<vmem>>, vector<1x8x32xbf16>
    %1 = vector.shape_cast %0 : vector<1x8x32xbf16> to vector<8x32xbf16>
    %c0_2 = arith.constant 0 : index
    %c0_3 = arith.constant 0 : index
    %2 = vector.load %arg3[%c0_2, %c0_3] : memref<32x64xbf16, #tpu.memory_space<vmem>>, vector<32x64xbf16>
    %cst = arith.constant dense<0.000000e+00> : vector<8x64xf32>
    %3 = tpu.matmul %1, %2, %cst {dimension_numbers = #tpu.dot_dimension_numbers<[1], [0], [0], [1], [0, 0, 1, 1], [], []>} : vector<8x32xbf16>, vector<32x64xbf16>, vector<8x64xf32> -> vector<8x64xf32>
    %4 = arith.truncf %3 : vector<8x64xf32> to vector<8x64xbf16>
    %c0_4 = arith.constant 0 : index
    %c0_5 = arith.constant 0 : index
    %c0_6 = arith.constant 0 : index
    %5 = vector.load %arg4[%c0_4, %c0_5, %c0_6] : memref<1x8x64xbf16, #tpu.memory_space<vmem>>, vector<1x8x64xbf16>
    %6 = vector.shape_cast %5 : vector<1x8x64xbf16> to vector<8x64xbf16>
    %7 = vector.shape_cast %4 : vector<8x64xbf16> to vector<1x8x64xbf16>
    tpu.vector_store %arg4[%c0_4, %c0_5, %c0_6], %7 {strides = array<i32>} : memref<1x8x64xbf16, #tpu.memory_space<vmem>>, vector<1x8x64xbf16>,
    return
  }
  func.func @transform_0(%arg0: i32, %arg1: i32) -> (i32, i32, i32) {
    %c0_i32 = arith.constant 0 : i32
    %c0_i32_0 = arith.constant 0 : i32
    return %arg0, %arg1, %c0_i32 : i32, i32, i32
  }
  func.func @transform_1(%arg0: i32, %arg1: i32) -> (i32, i32) {
    %c0_i32 = arith.constant 0 : i32
    %c0_i32_0 = arith.constant 0 : i32
    %c0_i32_1 = arith.constant 0 : i32
    return %c0_i32, %c0_i32_0 : i32, i32
  }
  func.func @transform_2(%arg0: i32, %arg1: i32) -> (i32, i32, i32) {
    %c0_i32 = arith.constant 0 : i32
    %c0_i32_0 = arith.constant 0 : i32
    return %arg0, %arg1, %c0_i32 : i32, i32, i32
  }
}

module attributes {stable_mosaic.version = 11 : i64} {
  func.func @_kv_proj_kernel(%arg0: i32, %arg1: i32, %arg2: memref<1x8x32xbf16, #tpu.memory_space<vmem>>, %arg3: memref<32x64xbf16, #tpu.memory_space<vmem>>, %arg4: memref<1x8x64xbf16, #tpu.memory_space<vmem>>) attributes {dimension_semantics = [#tpu.dimension_semantics<parallel>, #tpu.dimension_semantics<parallel>], iteration_bounds = array<i64: 2, 1>, scalar_prefetch = 0 : i64, scratch_operands = 0 : i64, tpu.core_type = #tpu.core_type<tc>, window_params = [{transform_indices = @transform_0, window_bounds = array<i64: 1, 8, 32>}, {pipeline_mode = #tpu.pipeline_mode<synchronous>, transform_indices = @transform_1, window_bounds = array<i64: 32, 64>}, {transform_indices = @transform_2, window_bounds = array<i64: 1, 8, 64>}]} {
    %c0 = arith.constant 0 : index
    %c0_0 = arith.constant 0 : index
    %c0_1 = arith.constant 0 : index
    %0 = vector.load %arg2[%c0, %c0_0, %c0_1] : memref<1x8x32xbf16, #tpu.memory_space<vmem>>, vector<1x8x32xbf16>
    %1 = vector.shape_cast %0 : vector<1x8x32xbf16> to vector<8x32xbf16>
    %c0_2 = arith.constant 0 : index
    %c0_3 = arith.constant 0 : index
    %2 = vector.load %arg3[%c0_2, %c0_3] : memref<32x64xbf16, #tpu.memory_space<vmem>>, vector<32x64xbf16>
    %cst = arith.constant dense<0.000000e+00> : vector<8x64xf32>
    %3 = tpu.matmul %1, %2, %cst {dimension_numbers = #tpu.dot_dimension_numbers<[1], [0], [0], [1], [0, 0, 1, 1], [], []>} : vector<8x32xbf16>, vector<32x64xbf16>, vector<8x64xf32> -> vector<8x64xf32>
    %4 = arith.truncf %3 : vector<8x64xf32> to vector<8x64xbf16>
    %c0_4 = arith.constant 0 : index
    %c0_5 = arith.constant 0 : index
    %c0_6 = arith.constant 0 : index
    %5 = vector.load %arg4[%c0_4, %c0_5, %c0_6] : memref<1x8x64xbf16, #tpu.memory_space<vmem>>, vector<1x8x64xbf16>
    %6 = vector.shape_cast %5 : vector<1x8x64xbf16> to vector<8x64xbf16>
    %7 = vector.shape_cast %4 : vector<8x64xbf16> to vector<1x8x64xbf16>
    tpu.vector_store %arg4[%c0_4, %c0_5, %c0_6], %7 {strides = array<i32>} : memref<1x8x64xbf16, #tpu.memory_space<vmem>>, vector<1x8x64xbf16>,
    return
  }
  func.func @transform_0(%arg0: i32, %arg1: i32) -> (i32, i32, i32) {
    %c0_i32 = arith.constant 0 : i32
    %c0_i32_0 = arith.constant 0 : i32
    return %arg0, %arg1, %c0_i32 : i32, i32, i32
  }
  func.func @transform_1(%arg0: i32, %arg1: i32) -> (i32, i32) {
    %c0_i32 = arith.constant 0 : i32
    %c0_i32_0 = arith.constant 0 : i32
    %c0_i32_1 = arith.constant 0 : i32
    return %c0_i32, %c0_i32_0 : i32, i32
  }
  func.func @transform_2(%arg0: i32, %arg1: i32) -> (i32, i32, i32) {
    %c0_i32 = arith.constant 0 : i32
    %c0_i32_0 = arith.constant 0 : i32
    return %arg0, %arg1, %c0_i32 : i32, i32, i32
  }
}

</mosaic_0001>

<llo_original>
// kernel: tpu_custom_call.1
$region0: #{tpu_custom_call.1}
  #allocation0 [shape = 'u32[]', space=smem, size = 0x4, offset = 0x4, fixed_abs, tag = 'smem constant byte address 0x4 - core index']
  #allocation1 [shape = 'u32[72,128]{1,0:T(1,128)}', space=vmem, size = 0x9000, scoped, tag = 'internal scratch']
  %s0 = inlined_call_operand.hbm [shape: bf16[2,8,32], index: 0, kind: input, shape index: {}]
  %s1 = inlined_call_operand.hbm [shape: bf16[32,64], index: 1, kind: input, shape index: {}]
  %s2 = inlined_call_operand.hbm [shape: bf16[2,8,64], index: 2, kind: output, shape index: {}]
  %s3 = sld [smem:[#allocation0]]
  $region49: #{tpu_custom_call.1} parent=0
    _
  %s5 = ssub.s32 1, %s3
  %s6 = scalar_select 0, %s5, %s3
  $region1: #{tpu_custom_call.1} parent=0
    #allocation2 [shape = 'u8[4096]{0}', space=vmem, size = 0x1000, scoped, tag = 'input window, operand 0']
    #allocation3 [shape = 's32[2]{0}', space=sflag, size = 0x8, scoped, tag = 'scoped memory for tpu_custom_call.1']
    #allocation4 [shape = 's32[2]{0}', space=sflag, size = 0x8, scoped, tag = 'scoped memory for tpu_custom_call.1']
    #allocation5 [shape = 'u8[8192]{0}', space=vmem, size = 0x2000, scoped, tag = 'input window, operand 1, single buffered']
    #allocation6 [shape = 's32[1]{0}', space=sflag, size = 0x4, scoped, tag = 'scoped memory for tpu_custom_call.1']
    #allocation7 [shape = 'u8[4096]{0}', space=vmem, size = 0x1000, scoped, tag = 'output window, operand 0']
    %7 = vsyncpa [#allocation3], 0
    %s8 = scalar_lea.sflag [#allocation3], 1
    %9 = vsyncpa %s8, 0
    %10 = vsyncpa [#allocation6], 0
    %11 = vsyncpa [#allocation4], 0
    %s12 = scalar_lea.sflag [#allocation4], 1
    %13 = vsyncpa %s12, 0
    loop: start=0, step=1, limit=4
    $region2: #{tpu_custom_call.1} parent=1 // loop_pre_header
      _
    $region3: #{tpu_custom_call.1} parent=1 // loop_header
      %s15 = sphi 0, %s19
      %p16 = scmp.ge.s32.totalorder %s15, 4
      %s22 = sphi 0, %s34
      %s23 = sphi 0, %s30
      %s24 = sphi 0, %s22
      %s25 = sphi 0, %s23
      %s26 = sphi 0, %s24
      %s27 = sphi 0, %s25
      %s39 = sphi 0, %s41
      %s42 = sphi 0, %s39
      %s43 = sphi 0, %s42
      %s59 = sphi 0, %s43
      %s63 = sphi 0, %s63
      %s65 = sphi 0, %s63
      %s66 = sphi 0, %s65
      %s80 = sphi 0, %s66
      %s88 = sphi 0, %s90
      %s91 = sphi 0, %s88
      %s92 = sphi 0, %s91
      %s108 = sphi 0, %s92
    $region4: #{tpu_custom_call.1} parent=1 // loop_header_branch
      %18 = sbr.rel (%p16) target = $region8
    $region5: #{tpu_custom_call.1} parent=1 // loop_body
      %s20 = ssub.s32 %s15, 1
      %s21 = ssub.s32 %s15, 2
      %s28 = sadd.s32 1, %s23
      %p29 = scmp.ge.s32.totalorder %s28, 1
      %s30 = scalar_select %p29, 0, %s28
      %s31 = sadd.s32 1, %s22
      %s32 = scalar_select %p29, %s31, %s22
      %p33 = scmp.ge.s32.totalorder %s32, 2
      %s34 = scalar_select %p33, 0, %s32
      %s35 = ssub.s32 %s22, %s34
      %s36 = ssub.s32 %s23, %s30
      %s37 = sor.u32 %s35, %s36
      %p38 = scmp.eq.s32.totalorder %s37, 0
      %s40 = sadd.s32 %s39, 1
      %s41 = scalar_select %p38, %s39, %s40
      %p44 = pneg %p38
      %p45 = scmp.eq.s32.totalorder %s15, 1
      %p46 = por %p44, %p45
      %p47 = scmp.ne.s32.totalorder %s39, %s42
      %p48 = scmp.eq.s32.totalorder %s15, 0
      %p49 = por %p47, %p48
      %p50 = scmp.ne.s32.totalorder %s39, %s42
      %p51 = scmp.eq.s32.totalorder %s20, 1
      %p52 = por %p50, %p51
      %p53 = scmp.ne.s32.totalorder %s42, %s43
      %p54 = scmp.eq.s32.totalorder %s20, 0
      %p55 = por %p53, %p54
      %p56 = scmp.ne.s32.totalorder %s42, %s43
      %p57 = scmp.eq.s32.totalorder %s21, 1
      %p58 = por %p56, %p57
      %p60 = scmp.ne.s32.totalorder %s43, %s59
      %p61 = scmp.eq.s32.totalorder %s21, 0
      %p62 = por %p60, %p61
      %s64 = sadd.s32 %s63, 1
      %p67 = scmp.eq.s32.totalorder %s15, 1
      %p68 = scmp.ne.s32.totalorder %s63, %s65
      %p69 = scmp.eq.s32.totalorder %s15, 0
      %p70 = por %p68, %p69
      %p71 = scmp.ne.s32.totalorder %s63, %s65
      %p72 = scmp.eq.s32.totalorder %s20, 1
      %p73 = por %p71, %p72
      %p74 = scmp.ne.s32.totalorder %s65, %s66
      %p75 = scmp.eq.s32.totalorder %s20, 0
      %p76 = por %p74, %p75
      %p77 = scmp.ne.s32.totalorder %s65, %s66
      %p78 = scmp.eq.s32.totalorder %s21, 1
      %p79 = por %p77, %p78
      %p81 = scmp.ne.s32.totalorder %s66, %s80
      %p82 = scmp.eq.s32.totalorder %s21, 0
      %p83 = por %p81, %p82
      %s84 = ssub.s32 %s22, %s34
      %s85 = ssub.s32 %s23, %s30
      %s86 = sor.u32 %s84, %s85
      %p87 = scmp.eq.s32.totalorder %s86, 0
      %s89 = sadd.s32 %s88, 1
      %s90 = scalar_select %p87, %s88, %s89
      %p93 = pneg %p87
      %p94 = scmp.eq.s32.totalorder %s15, 1
      %p95 = por %p93, %p94
      %p96 = scmp.ne.s32.totalorder %s88, %s91
      %p97 = scmp.eq.s32.totalorder %s15, 0
      %p98 = por %p96, %p97
      %p99 = scmp.ne.s32.totalorder %s88, %s91
      %p100 = scmp.eq.s32.totalorder %s20, 1
      %p101 = por %p99, %p100
      %p102 = scmp.ne.s32.totalorder %s91, %s92
      %p103 = scmp.eq.s32.totalorder %s20, 0
      %p104 = por %p102, %p103
      %p105 = scmp.ne.s32.totalorder %s91, %s92
      %p106 = scmp.eq.s32.totalorder %s21, 1
      %p107 = por %p105, %p106
      %p109 = scmp.ne.s32.totalorder %s92, %s108
      %p110 = scmp.eq.s32.totalorder %s21, 0
      %p111 = por %p109, %p110
      %p112 = scmp.le.s32.totalorder 1, %s15
      %p113 = scmp.lt.s32.totalorder %s15, 3
      %p114 = pnand %p112, %p113
      %p115 = pneg %p114
      // Predicated region
      $region9: #{tpu_custom_call.1} parent=5 // pred_check
        _
      $region10: #{tpu_custom_call.1} parent=5 // pred_check_branch
        %117 = sbr.rel (%p114) target = $region12
      $region11: #{tpu_custom_call.1} parent=5 // pred_region
        %s118 = ssub.s32 %s15, 1
        // Predicated region
        $region13: #{tpu_custom_call.1} parent=11 // pred_check
          %p119 = pneg %p76
        $region14: #{tpu_custom_call.1} parent=11 // pred_check_branch
          %121 = sbr.rel (%p119) target = $region16
        $region15: #{tpu_custom_call.1} parent=11 // pred_region
          %123 = vsyncadd [#allocation6], 0
          %s124 = sshll.u32 %s1, 4
          %s125 = int_to_ptr.hbm [resolvable:$true] %s124
          %s126 = sshll.u32 [#allocation5], 4
          %s127 = int_to_ptr.vmem [resolvable:$true] %s126
          %132 = dma.hbm_to_vmem [thread:$0]  %s125, 256, %s127, [#allocation6], 64, 64, 4
        $region16: #{tpu_custom_call.1} parent=11 // pred_fallthru
          _
      $region12: #{tpu_custom_call.1} parent=5 // pred_fallthru
        _
      %p133 = scmp.lt.s32.totalorder %s15, 2
      // Predicated region
      $region17: #{tpu_custom_call.1} parent=5 // pred_check
        %p134 = pneg %p133
      $region18: #{tpu_custom_call.1} parent=5 // pred_check_branch
        %136 = sbr.rel (%p134) target = $region20
      $region19: #{tpu_custom_call.1} parent=5 // pred_region
        // Predicated region
        $region21: #{tpu_custom_call.1} parent=19 // pred_check
          %p137 = pneg %p49
        $region22: #{tpu_custom_call.1} parent=19 // pred_check_branch
          %139 = sbr.rel (%p137) target = $region24
        $region23: #{tpu_custom_call.1} parent=19 // pred_region
          %s140 = sand.u32 %s39, 1
          %s141 = scalar_lea.sflag [#allocation3], %s140
          %s142 = sand.u32 %s39, 1
          %s143 = smul.addr %s142, 4
          %s144 = scalar_lea.vmem [#allocation2], %s143
          %146 = vsyncadd %s141, 0
          %s147 = sadd.s32 %s23, %s22
          %s148 = smul.addr %s147, 4
          %s149 = scalar_lea.hbm %s0, %s148
          %s151 = sshll.u32 %s149, 4
          %s152 = int_to_ptr.hbm [resolvable:$true] %s151
          %s153 = sshll.u32 %s144, 4
          %s154 = int_to_ptr.vmem [resolvable:$true] %s153
          %156 = dma.hbm_to_vmem [thread:$0]  %s152, 64, %s154, %s141
        $region24: #{tpu_custom_call.1} parent=19 // pred_fallthru
          _
      $region20: #{tpu_custom_call.1} parent=5 // pred_fallthru
        _
      %p157 = scmp.le.s32.totalorder 1, %s15
      %p158 = scmp.lt.s32.totalorder %s15, 3
      %p159 = pnand %p157, %p158
      %p160 = pneg %p159
      // Predicated region
      $region25: #{tpu_custom_call.1} parent=5 // pred_check
        _
      $region26: #{tpu_custom_call.1} parent=5 // pred_check_branch
        %162 = sbr.rel (%p159) target = $region28
      $region27: #{tpu_custom_call.1} parent=5 // pred_region
        %s163 = ssub.s32 %s15, 1
        %s164 = sand.u32 %s42, 1
        %s165 = scalar_lea.sflag [#allocation3], %s164
        %s166 = sand.u32 %s42, 1
        %s167 = smul.addr %s166, 4
        %s168 = scalar_lea.vmem [#allocation2], %s167
        // Predicated region
        $region29: #{tpu_custom_call.1} parent=27 // pred_check
          %p169 = pneg %p55
        $region30: #{tpu_custom_call.1} parent=27 // pred_check_branch
          %171 = sbr.rel (%p169) target = $region32
        $region31: #{tpu_custom_call.1} parent=27 // pred_region
          %173 = dma.done %s165, 64
        $region32: #{tpu_custom_call.1} parent=27 // pred_fallthru
          _
        // Predicated region
        $region33: #{tpu_custom_call.1} parent=27 // pred_check
          %p174 = pneg %p76
        $region34: #{tpu_custom_call.1} parent=27 // pred_check_branch
          %176 = sbr.rel (%p174) target = $region36
        $region35: #{tpu_custom_call.1} parent=27 // pred_region
          %178 = dma.done [#allocation6], 256
        $region36: #{tpu_custom_call.1} parent=27 // pred_fallthru
          _
        %s179 = sand.u32 %s42, 1
        %s180 = scalar_lea.sflag [#allocation3], %s179
        %s181 = sand.u32 %s42, 1
        %s182 = smul.addr %s181, 4
        %s183 = scalar_lea.vmem [#allocation2], %s182
        %p184 = pneg %p55
        %p185 = pneg %p52
        %p186 = pneg %p76
        %p187 = pneg %p73
        %p188 = pneg %p104
        %p189 = pneg %p101
        %s190 = sand.u32 %s91, 1
        %s191 = scalar_lea.sflag [#allocation4], %s190
        %s192 = sand.u32 %s91, 1
        %s193 = smul.addr %s192, 4
        %s194 = scalar_lea.vmem [#allocation7], %s193
        %v196 = vld [vmem:[%s168] sm:$0xf]
        %v197 = vld [vmem:[#allocation5] sm:$0xf]
        %v198 = vld [vmem:[#allocation5 + $0x4] sm:$0xf]
        %v199 = vld [vmem:[#allocation5 + $0x8] sm:$0xf]
        %v200 = vld [vmem:[#allocation5 + $0xc] sm:$0xf]
        %v205 = vunpack.c.l.b16 %v197
        %v206 = vunpack.c.l.b16 %v198
        %v207 = vunpack.c.l.b16 %v199
        %v208 = vunpack.c.l.b16 %v200
        %v209 = vpack.c.b16 %v206, %v205
        %v210 = vpack.c.b16 %v208, %v207
        %vm213 = vcmask 261120
        %v215 = vsel %vm213, %v196, 0
        %217 = vmatpush.bf16.msra.mxu0 0
        %218 = vmatpush.bf16.msra.mxu0 0
        %219 = vmatpush.bf16.msra.mxu0 0
        %220 = vmatpush.bf16.msra.mxu0 0
        %221 = vmatpush.bf16.msra.mxu0 0
        %222 = vmatpush.bf16.msra.mxu0 0
        %223 = vmatpush.bf16.msra.mxu0 %v210
        %224 = vmatpush.bf16.msra.mxu0 %v209
        %225 = vmatmul.bf16.gmra.mxu0 %v215
        %v226 = vpop.f32.mrf.mxu0
        %v227 = vadd.f32 0.0, %v226
        %v228 = vpop.f32.mrf.mxu0
        %229 = vdwg.mxu0
        %v230 = vpack.c.bf16 %v227, %v227
        %vm231 = vcmask 519168
        %232 = vst.msk [vmem:[%s194] sm:$0xf] %vm231, %v230
        %s233 = sand.u32 %s91, 1
        %s234 = scalar_lea.sflag [#allocation4], %s233
        %s235 = sand.u32 %s91, 1
        %s236 = smul.addr %s235, 4
        %s237 = scalar_lea.vmem [#allocation7], %s236
        // Predicated region
        $region37: #{tpu_custom_call.1} parent=27 // pred_check
          %p238 = pneg %p101
        $region38: #{tpu_custom_call.1} parent=27 // pred_check_branch
          %240 = sbr.rel (%p238) target = $region40
        $region39: #{tpu_custom_call.1} parent=27 // pred_region
          %242 = vsyncadd %s234, 0
          %s243 = sadd.s32 %s25, %s24
          %s244 = smul.addr %s243, 4
          %s245 = scalar_lea.hbm %s2, %s244
          %s247 = sshll.u32 %s237, 4
          %s248 = int_to_ptr.vmem [resolvable:$true] %s247
          %s249 = sshll.u32 %s245, 4
          %s250 = int_to_ptr.hbm [resolvable:$true] %s249
          %252 = dma.vmem_to_hbm [thread:$0]  %s248, 64, %s250, %s234
        $region40: #{tpu_custom_call.1} parent=27 // pred_fallthru
          _
      $region28: #{tpu_custom_call.1} parent=5 // pred_fallthru
        _
      %p253 = scmp.le.s32.totalorder 2, %s15
      // Predicated region
      $region41: #{tpu_custom_call.1} parent=5 // pred_check
        %p254 = pneg %p253
      $region42: #{tpu_custom_call.1} parent=5 // pred_check_branch
        %256 = sbr.rel (%p254) target = $region44
      $region43: #{tpu_custom_call.1} parent=5 // pred_region
        %s257 = ssub.s32 %s15, 2
        // Predicated region
        $region45: #{tpu_custom_call.1} parent=43 // pred_check
          %p258 = pneg %p107
        $region46: #{tpu_custom_call.1} parent=43 // pred_check_branch
          %260 = sbr.rel (%p258) target = $region48
        $region47: #{tpu_custom_call.1} parent=43 // pred_region
          %s261 = sand.u32 %s92, 1
          %s262 = scalar_lea.sflag [#allocation4], %s261
          %s263 = sand.u32 %s92, 1
          %s264 = smul.addr %s263, 4
          %s265 = scalar_lea.vmem [#allocation7], %s264
          %267 = dma.done %s262, 64
        $region48: #{tpu_custom_call.1} parent=43 // pred_fallthru
          _
      $region44: #{tpu_custom_call.1} parent=5 // pred_fallthru
        _
    $region6: #{tpu_custom_call.1} parent=1 // loop_footer
      %s19 = sadd.s32 1, %s15
    $region7: #{tpu_custom_call.1} parent=1 // loop_footer_branch
      %14 = sbr.rel target = $region3
    $region8: #{tpu_custom_call.1} parent=1 // loop_exit
      _
    %268 = vsyncpa [#allocation3], 1
    %s269 = scalar_lea.sflag [#allocation3], 1
    %270 = vsyncpa %s269, 1
    %271 = vsyncpa [#allocation6], 1
    %272 = vsyncpa [#allocation4], 1
    %s273 = scalar_lea.sflag [#allocation4], 1
    %274 = vsyncpa %s273, 1

// kernel: tpu_custom_call.1
$region0: #{tpu_custom_call.1}
  #allocation0 [shape = 'u32[]', space=smem, size = 0x4, offset = 0x4, fixed_abs, tag = 'smem constant byte address 0x4 - core index']
  #allocation1 [shape = 'u32[72,128]{1,0:T(1,128)}', space=vmem, size = 0x9000, scoped, tag = 'internal scratch']
  %s0 = inlined_call_operand.hbm [shape: bf16[2,8,32], index: 0, kind: input, shape index: {}]
  %s1 = inlined_call_operand.hbm [shape: bf16[32,64], index: 1, kind: input, shape index: {}]
  %s2 = inlined_call_operand.hbm [shape: bf16[2,8,64], index: 2, kind: output, shape index: {}]
  %s3 = sld [smem:[#allocation0]]
  $region49: #{tpu_custom_call.1} parent=0
    _
  %s5 = ssub.s32 1, %s3
  %s6 = scalar_select 0, %s5, %s3
  $region1: #{tpu_custom_call.1} parent=0
    #allocation2 [shape = 'u8[4096]{0}', space=vmem, size = 0x1000, scoped, tag = 'input window, operand 0']
    #allocation3 [shape = 's32[2]{0}', space=sflag, size = 0x8, scoped, tag = 'scoped memory for tpu_custom_call.1']
    #allocation4 [shape = 's32[2]{0}', space=sflag, size = 0x8, scoped, tag = 'scoped memory for tpu_custom_call.1']
    #allocation5 [shape = 'u8[8192]{0}', space=vmem, size = 0x2000, scoped, tag = 'input window, operand 1, single buffered']
    #allocation6 [shape = 's32[1]{0}', space=sflag, size = 0x4, scoped, tag = 'scoped memory for tpu_custom_call.1']
    #allocation7 [shape = 'u8[4096]{0}', space=vmem, size = 0x1000, scoped, tag = 'output window, operand 0']
    %7 = vsyncpa [#allocation3], 0
    %s8 = scalar_lea.sflag [#allocation3], 1
    %9 = vsyncpa %s8, 0
    %10 = vsyncpa [#allocation6], 0
    %11 = vsyncpa [#allocation4], 0
    %s12 = scalar_lea.sflag [#allocation4], 1
    %13 = vsyncpa %s12, 0
    loop: start=0, step=1, limit=4
    $region2: #{tpu_custom_call.1} parent=1 // loop_pre_header
      _
    $region3: #{tpu_custom_call.1} parent=1 // loop_header
      %s15 = sphi 0, %s19
      %p16 = scmp.ge.s32.totalorder %s15, 4
      %s22 = sphi 0, %s34
      %s23 = sphi 0, %s30
      %s24 = sphi 0, %s22
      %s25 = sphi 0, %s23
      %s26 = sphi 0, %s24
      %s27 = sphi 0, %s25
      %s39 = sphi 0, %s41
      %s42 = sphi 0, %s39
      %s43 = sphi 0, %s42
      %s59 = sphi 0, %s43
      %s63 = sphi 0, %s63
      %s65 = sphi 0, %s63
      %s66 = sphi 0, %s65
      %s80 = sphi 0, %s66
      %s88 = sphi 0, %s90
      %s91 = sphi 0, %s88
      %s92 = sphi 0, %s91
      %s108 = sphi 0, %s92
    $region4: #{tpu_custom_call.1} parent=1 // loop_header_branch
      %18 = sbr.rel (%p16) target = $region8
    $region5: #{tpu_custom_call.1} parent=1 // loop_body
      %s20 = ssub.s32 %s15, 1
      %s21 = ssub.s32 %s15, 2
      %s28 = sadd.s32 1, %s23
      %p29 = scmp.ge.s32.totalorder %s28, 1
      %s30 = scalar_select %p29, 0, %s28
      %s31 = sadd.s32 1, %s22
      %s32 = scalar_select %p29, %s31, %s22
      %p33 = scmp.ge.s32.totalorder %s32, 2
      %s34 = scalar_select %p33, 0, %s32
      %s35 = ssub.s32 %s22, %s34
      %s36 = ssub.s32 %s23, %s30
      %s37 = sor.u32 %s35, %s36
      %p38 = scmp.eq.s32.totalorder %s37, 0
      %s40 = sadd.s32 %s39, 1
      %s41 = scalar_select %p38, %s39, %s40
      %p44 = pneg %p38
      %p45 = scmp.eq.s32.totalorder %s15, 1
      %p46 = por %p44, %p45
      %p47 = scmp.ne.s32.totalorder %s39, %s42
      %p48 = scmp.eq.s32.totalorder %s15, 0
      %p49 = por %p47, %p48
      %p50 = scmp.ne.s32.totalorder %s39, %s42
      %p51 = scmp.eq.s32.totalorder %s20, 1
      %p52 = por %p50, %p51
      %p53 = scmp.ne.s32.totalorder %s42, %s43
      %p54 = scmp.eq.s32.totalorder %s20, 0
      %p55 = por %p53, %p54
      %p56 = scmp.ne.s32.totalorder %s42, %s43
      %p57 = scmp.eq.s32.totalorder %s21, 1
      %p58 = por %p56, %p57
      %p60 = scmp.ne.s32.totalorder %s43, %s59
      %p61 = scmp.eq.s32.totalorder %s21, 0
      %p62 = por %p60, %p61
      %s64 = sadd.s32 %s63, 1
      %p67 = scmp.eq.s32.totalorder %s15, 1
      %p68 = scmp.ne.s32.totalorder %s63, %s65
      %p69 = scmp.eq.s32.totalorder %s15, 0
      %p70 = por %p68, %p69
      %p71 = scmp.ne.s32.totalorder %s63, %s65
      %p72 = scmp.eq.s32.totalorder %s20, 1
      %p73 = por %p71, %p72
      %p74 = scmp.ne.s32.totalorder %s65, %s66
      %p75 = scmp.eq.s32.totalorder %s20, 0
      %p76 = por %p74, %p75
      %p77 = scmp.ne.s32.totalorder %s65, %s66
      %p78 = scmp.eq.s32.totalorder %s21, 1
      %p79 = por %p77, %p78
      %p81 = scmp.ne.s32.totalorder %s66, %s80
      %p82 = scmp.eq.s32.totalorder %s21, 0
      %p83 = por %p81, %p82
      %s84 = ssub.s32 %s22, %s34
      %s85 = ssub.s32 %s23, %s30
      %s86 = sor.u32 %s84, %s85
      %p87 = scmp.eq.s32.totalorder %s86, 0
      %s89 = sadd.s32 %s88, 1
      %s90 = scalar_select %p87, %s88, %s89
      %p93 = pneg %p87
      %p94 = scmp.eq.s32.totalorder %s15, 1
      %p95 = por %p93, %p94
      %p96 = scmp.ne.s32.totalorder %s88, %s91
      %p97 = scmp.eq.s32.totalorder %s15, 0
      %p98 = por %p96, %p97
      %p99 = scmp.ne.s32.totalorder %s88, %s91
      %p100 = scmp.eq.s32.totalorder %s20, 1
      %p101 = por %p99, %p100
      %p102 = scmp.ne.s32.totalorder %s91, %s92
      %p103 = scmp.eq.s32.totalorder %s20, 0
      %p104 = por %p102, %p103
      %p105 = scmp.ne.s32.totalorder %s91, %s92
      %p106 = scmp.eq.s32.totalorder %s21, 1
      %p107 = por %p105, %p106
      %p109 = scmp.ne.s32.totalorder %s92, %s108
      %p110 = scmp.eq.s32.totalorder %s21, 0
      %p111 = por %p109, %p110
      %p112 = scmp.le.s32.totalorder 1, %s15
      %p113 = scmp.lt.s32.totalorder %s15, 3
      %p114 = pnand %p112, %p113
      %p115 = pneg %p114
      // Predicated region
      $region9: #{tpu_custom_call.1} parent=5 // pred_check
        _
      $region10: #{tpu_custom_call.1} parent=5 // pred_check_branch
        %117 = sbr.rel (%p114) target = $region12
      $region11: #{tpu_custom_call.1} parent=5 // pred_region
        %s118 = ssub.s32 %s15, 1
        // Predicated region
        $region13: #{tpu_custom_call.1} parent=11 // pred_check
          %p119 = pneg %p76
        $region14: #{tpu_custom_call.1} parent=11 // pred_check_branch
          %121 = sbr.rel (%p119) target = $region16
        $region15: #{tpu_custom_call.1} parent=11 // pred_region
          %123 = vsyncadd [#allocation6], 0
          %s124 = sshll.u32 %s1, 4
          %s125 = int_to_ptr.hbm [resolvable:$true] %s124
          %s126 = sshll.u32 [#allocation5], 4
          %s127 = int_to_ptr.vmem [resolvable:$true] %s126
          %132 = dma.hbm_to_vmem [thread:$0]  %s125, 256, %s127, [#allocation6], 64, 64, 4
        $region16: #{tpu_custom_call.1} parent=11 // pred_fallthru
          _
      $region12: #{tpu_custom_call.1} parent=5 // pred_fallthru
        _
      %p133 = scmp.lt.s32.totalorder %s15, 2
      // Predicated region
      $region17: #{tpu_custom_call.1} parent=5 // pred_check
        %p134 = pneg %p133
      $region18: #{tpu_custom_call.1} parent=5 // pred_check_branch
        %136 = sbr.rel (%p134) target = $region20
      $region19: #{tpu_custom_call.1} parent=5 // pred_region
        // Predicated region
        $region21: #{tpu_custom_call.1} parent=19 // pred_check
          %p137 = pneg %p49
        $region22: #{tpu_custom_call.1} parent=19 // pred_check_branch
          %139 = sbr.rel (%p137) target = $region24
        $region23: #{tpu_custom_call.1} parent=19 // pred_region
          %s140 = sand.u32 %s39, 1
          %s141 = scalar_lea.sflag [#allocation3], %s140
          %s142 = sand.u32 %s39, 1
          %s143 = smul.addr %s142, 4
          %s144 = scalar_lea.vmem [#allocation2], %s143
          %146 = vsyncadd %s141, 0
          %s147 = sadd.s32 %s23, %s22
          %s148 = smul.addr %s147, 4
          %s149 = scalar_lea.hbm %s0, %s148
          %s151 = sshll.u32 %s149, 4
          %s152 = int_to_ptr.hbm [resolvable:$true] %s151
          %s153 = sshll.u32 %s144, 4
          %s154 = int_to_ptr.vmem [resolvable:$true] %s153
          %156 = dma.hbm_to_vmem [thread:$0]  %s152, 64, %s154, %s141
        $region24: #{tpu_custom_call.1} parent=19 // pred_fallthru
          _
      $region20: #{tpu_custom_call.1} parent=5 // pred_fallthru
        _
      %p157 = scmp.le.s32.totalorder 1, %s15
      %p158 = scmp.lt.s32.totalorder %s15, 3
      %p159 = pnand %p157, %p158
      %p160 = pneg %p159
      // Predicated region
      $region25: #{tpu_custom_call.1} parent=5 // pred_check
        _
      $region26: #{tpu_custom_call.1} parent=5 // pred_check_branch
        %162 = sbr.rel (%p159) target = $region28
      $region27: #{tpu_custom_call.1} parent=5 // pred_region
        %s163 = ssub.s32 %s15, 1
        %s164 = sand.u32 %s42, 1
        %s165 = scalar_lea.sflag [#allocation3], %s164
        %s166 = sand.u32 %s42, 1
        %s167 = smul.addr %s166, 4
        %s168 = scalar_lea.vmem [#allocation2], %s167
        // Predicated region
        $region29: #{tpu_custom_call.1} parent=27 // pred_check
          %p169 = pneg %p55
        $region30: #{tpu_custom_call.1} parent=27 // pred_check_branch
          %171 = sbr.rel (%p169) target = $region32
        $region31: #{tpu_custom_call.1} parent=27 // pred_region
          %173 = dma.done %s165, 64
        $region32: #{tpu_custom_call.1} parent=27 // pred_fallthru
          _
        // Predicated region
        $region33: #{tpu_custom_call.1} parent=27 // pred_check
          %p174 = pneg %p76
        $region34: #{tpu_custom_call.1} parent=27 // pred_check_branch
          %176 = sbr.rel (%p174) target = $region36
        $region35: #{tpu_custom_call.1} parent=27 // pred_region
          %178 = dma.done [#allocation6], 256
        $region36: #{tpu_custom_call.1} parent=27 // pred_fallthru
          _
        %s179 = sand.u32 %s42, 1
        %s180 = scalar_lea.sflag [#allocation3], %s179
        %s181 = sand.u32 %s42, 1
        %s182 = smul.addr %s181, 4
        %s183 = scalar_lea.vmem [#allocation2], %s182
        %p184 = pneg %p55
        %p185 = pneg %p52
        %p186 = pneg %p76
        %p187 = pneg %p73
        %p188 = pneg %p104
        %p189 = pneg %p101
        %s190 = sand.u32 %s91, 1
        %s191 = scalar_lea.sflag [#allocation4], %s190
        %s192 = sand.u32 %s91, 1
        %s193 = smul.addr %s192, 4
        %s194 = scalar_lea.vmem [#allocation7], %s193
        %v196 = vld [vmem:[%s168] sm:$0xf]
        %v197 = vld [vmem:[#allocation5] sm:$0xf]
        %v198 = vld [vmem:[#allocation5 + $0x4] sm:$0xf]
        %v199 = vld [vmem:[#allocation5 + $0x8] sm:$0xf]
        %v200 = vld [vmem:[#allocation5 + $0xc] sm:$0xf]
        %v205 = vunpack.c.l.b16 %v197
        %v206 = vunpack.c.l.b16 %v198
        %v207 = vunpack.c.l.b16 %v199
        %v208 = vunpack.c.l.b16 %v200
        %v209 = vpack.c.b16 %v206, %v205
        %v210 = vpack.c.b16 %v208, %v207
        %vm213 = vcmask 261120
        %v215 = vsel %vm213, %v196, 0
        %217 = vmatpush.bf16.msra.mxu0 0
        %218 = vmatpush.bf16.msra.mxu0 0
        %219 = vmatpush.bf16.msra.mxu0 0
        %220 = vmatpush.bf16.msra.mxu0 0
        %221 = vmatpush.bf16.msra.mxu0 0
        %222 = vmatpush.bf16.msra.mxu0 0
        %223 = vmatpush.bf16.msra.mxu0 %v210
        %224 = vmatpush.bf16.msra.mxu0 %v209
        %225 = vmatmul.bf16.gmra.mxu0 %v215
        %v226 = vpop.f32.mrf.mxu0
        %v227 = vadd.f32 0.0, %v226
        %v228 = vpop.f32.mrf.mxu0
        %229 = vdwg.mxu0
        %v230 = vpack.c.bf16 %v227, %v227
        %vm231 = vcmask 519168
        %232 = vst.msk [vmem:[%s194] sm:$0xf] %vm231, %v230
        %s233 = sand.u32 %s91, 1
        %s234 = scalar_lea.sflag [#allocation4], %s233
        %s235 = sand.u32 %s91, 1
        %s236 = smul.addr %s235, 4
        %s237 = scalar_lea.vmem [#allocation7], %s236
        // Predicated region
        $region37: #{tpu_custom_call.1} parent=27 // pred_check
          %p238 = pneg %p101
        $region38: #{tpu_custom_call.1} parent=27 // pred_check_branch
          %240 = sbr.rel (%p238) target = $region40
        $region39: #{tpu_custom_call.1} parent=27 // pred_region
          %242 = vsyncadd %s234, 0
          %s243 = sadd.s32 %s25, %s24
          %s244 = smul.addr %s243, 4
          %s245 = scalar_lea.hbm %s2, %s244
          %s247 = sshll.u32 %s237, 4
          %s248 = int_to_ptr.vmem [resolvable:$true] %s247
          %s249 = sshll.u32 %s245, 4
          %s250 = int_to_ptr.hbm [resolvable:$true] %s249
          %252 = dma.vmem_to_hbm [thread:$0]  %s248, 64, %s250, %s234
        $region40: #{tpu_custom_call.1} parent=27 // pred_fallthru
          _
      $region28: #{tpu_custom_call.1} parent=5 // pred_fallthru
        _
      %p253 = scmp.le.s32.totalorder 2, %s15
      // Predicated region
      $region41: #{tpu_custom_call.1} parent=5 // pred_check
        %p254 = pneg %p253
      $region42: #{tpu_custom_call.1} parent=5 // pred_check_branch
        %256 = sbr.rel (%p254) target = $region44
      $region43: #{tpu_custom_call.1} parent=5 // pred_region
        %s257 = ssub.s32 %s15, 2
        // Predicated region
        $region45: #{tpu_custom_call.1} parent=43 // pred_check
          %p258 = pneg %p107
        $region46: #{tpu_custom_call.1} parent=43 // pred_check_branch
          %260 = sbr.rel (%p258) target = $region48
        $region47: #{tpu_custom_call.1} parent=43 // pred_region
          %s261 = sand.u32 %s92, 1
          %s262 = scalar_lea.sflag [#allocation4], %s261
          %s263 = sand.u32 %s92, 1
          %s264 = smul.addr %s263, 4
          %s265 = scalar_lea.vmem [#allocation7], %s264
          %267 = dma.done %s262, 64
        $region48: #{tpu_custom_call.1} parent=43 // pred_fallthru
          _
      $region44: #{tpu_custom_call.1} parent=5 // pred_fallthru
        _
    $region6: #{tpu_custom_call.1} parent=1 // loop_footer
      %s19 = sadd.s32 1, %s15
    $region7: #{tpu_custom_call.1} parent=1 // loop_footer_branch
      %14 = sbr.rel target = $region3
    $region8: #{tpu_custom_call.1} parent=1 // loop_exit
      _
    %268 = vsyncpa [#allocation3], 1
    %s269 = scalar_lea.sflag [#allocation3], 1
    %270 = vsyncpa %s269, 1
    %271 = vsyncpa [#allocation6], 1
    %272 = vsyncpa [#allocation4], 1
    %s273 = scalar_lea.sflag [#allocation4], 1
    %274 = vsyncpa %s273, 1

</llo_original>
